<compile_context>
chip_gen: v7x
topology: tpu7x:2x2x1
jax: 0.10.0
libtpu: 0.0.40
codegen_flags: <defaults>
</compile_context>

<pallas_src>
import math

import jax
import jax.numpy as jnp
from jax.experimental import pallas as pl
from jax.experimental.pallas import tpu as pltpu


def fm_kernel(ue_ref, ie_ref, out_ref):
    # ue_ref / ie_ref : (TILE_B, k+3) f32 VMEM tiles of the augmented embeddings
    # out_ref         : (TILE_B, 1)  f32 prediction tile
    prod = ue_ref[...] * ie_ref[...]
    out_ref[...] = jnp.sum(prod, axis=1, keepdims=True)


def _round_up(x, m):
    return ((x + m - 1) // m) * m


def factorization_machine_forward(user, item, params, *, max_tile_b=2048):
    """user, item: int32 (B,) index arrays. Returns f32 (B,) predictions."""
    B = user.shape[0]
    k = params["user_embedding"].shape[1]

    tile_b = min(max_tile_b, _round_up(B, 128))   # multiple of 128, capped
    b_pad = _round_up(B, tile_b)
    num_tiles = b_pad // tile_b

    # --- glue: embedding gathers (nn.Embedding lookups) + FM augmentation ---
    user_p = jnp.pad(user, (0, b_pad - B))        # pad with index 0 (valid row)
    item_p = jnp.pad(item, (0, b_pad - B))

    ue = jnp.take(params["user_embedding"], user_p, axis=0)   # (B_pad, k)
    ie = jnp.take(params["item_embedding"], item_p, axis=0)   # (B_pad, k)
    ub = jnp.take(params["user_bias"], user_p, axis=0)        # (B_pad, 1)
    ib = jnp.take(params["item_bias"], item_p, axis=0)        # (B_pad, 1)

    ones = jnp.ones((b_pad, 1), jnp.float32)
    gb_col = jnp.broadcast_to(
        params["global_bias"].astype(jnp.float32).reshape(1, 1), (b_pad, 1))

    # row-dot([ue | ub | 1 | 1], [ie | 1 | ib | gb]) = ue.ie + ub + ib + gb
    ue_aug = jnp.concatenate([ue, ub, ones, ones], axis=1).astype(jnp.float32)
    ie_aug = jnp.concatenate([ie, ones, ib, gb_col], axis=1).astype(jnp.float32)
    k_aug = k + 3

    out = pl.pallas_call(
        fm_kernel,
        out_shape=jax.ShapeDtypeStruct((b_pad, 1), jnp.float32),
        grid=(num_tiles,),
        in_specs=[
            pl.BlockSpec((tile_b, k_aug), lambda i: (i, 0)),
            pl.BlockSpec((tile_b, k_aug), lambda i: (i, 0)),
        ],
        out_specs=pl.BlockSpec((tile_b, 1), lambda i: (i, 0)),
        compiler_params=pltpu.CompilerParams(
            dimension_semantics=("parallel",),
            vmem_limit_bytes=32 * 1024 * 1024,
        ),
    )(ue_aug, ie_aug)

    return out[:B, 0]   # drop padded rows, squeeze -> (B,)


def init_params(key, num_users, num_items, k):
    ku, ki = jax.random.split(key)
    # xavier_uniform_ on a (rows, k) weight: bound = sqrt(6 / (rows + k))
    bu = math.sqrt(6.0 / (num_users + k))
    bi = math.sqrt(6.0 / (num_items + k))
    return {
        "user_embedding": jax.random.uniform(
            ku, (num_users, k), jnp.float32, minval=-bu, maxval=bu),
        "item_embedding": jax.random.uniform(
            ki, (num_items, k), jnp.float32, minval=-bi, maxval=bi),
        "user_bias": jnp.zeros((num_users, 1), jnp.float32),
        "item_bias": jnp.zeros((num_items, 1), jnp.float32),
        "global_bias": jnp.array(0.0, jnp.float32),
    }


if __name__ == "__main__":
    num_users, num_items, k = 32, 48, 32
    B = 8

    key = jax.random.PRNGKey(0)
    kp, ku, ki = jax.random.split(key, 3)
    params = init_params(kp, num_users, num_items, k)

    user = jax.random.randint(ku, (B,), 0, num_users, dtype=jnp.int32)
    item = jax.random.randint(ki, (B,), 0, num_items, dtype=jnp.int32)

    fm_fwd = jax.jit(factorization_machine_forward)
    pred = fm_fwd(user, item, params)
    jax.block_until_ready(pred)

    # reference check in plain JAX
    ref = (params["global_bias"]
           + params["user_bias"][user, 0]
           + params["item_bias"][item, 0]
           + jnp.sum(params["user_embedding"][user] * params["item_embedding"][item],
                     axis=1))
    assert pred.shape == (B,), pred.shape
    assert jnp.allclose(pred, ref, atol=1e-5, rtol=1e-5), (pred, ref)

    print("KERNEL_OK")
</pallas_src>

<mosaic_0001>
module attributes {stable_mosaic.version = 11 : i64} {
  func.func @fm_kernel(%arg0: i32, %arg1: memref<128x35xf32, #tpu.memory_space<vmem>>, %arg2: memref<128x35xf32, #tpu.memory_space<vmem>>, %arg3: memref<128x1xf32, #tpu.memory_space<vmem>>) attributes {dimension_semantics = [#tpu.dimension_semantics<parallel>], iteration_bounds = array<i64: 1>, scalar_prefetch = 0 : i64, scratch_operands = 0 : i64, tpu.core_type = #tpu.core_type<tc>, window_params = [{transform_indices = @transform_0, window_bounds = array<i64: 128, 35>}, {transform_indices = @transform_1, window_bounds = array<i64: 128, 35>}, {transform_indices = @transform_2, window_bounds = array<i64: 128, 1>}]} {
    %c0 = arith.constant 0 : index
    %c0_0 = arith.constant 0 : index
    %0 = vector.load %arg1[%c0, %c0_0] : memref<128x35xf32, #tpu.memory_space<vmem>>, vector<128x35xf32>
    %c0_1 = arith.constant 0 : index
    %c0_2 = arith.constant 0 : index
    %1 = vector.load %arg2[%c0_1, %c0_2] : memref<128x35xf32, #tpu.memory_space<vmem>>, vector<128x35xf32>
    %2 = arith.mulf %0, %1 : vector<128x35xf32>
    %cst = arith.constant dense<0.000000e+00> : vector<128xf32>
    %3 = vector.multi_reduction <add>, %2, %cst [1] : vector<128x35xf32> to vector<128xf32>
    %4 = vector.shape_cast %3 : vector<128xf32> to vector<128x1xf32>
    %c0_3 = arith.constant 0 : index
    %c0_4 = arith.constant 0 : index
    %5 = vector.load %arg3[%c0_3, %c0_4] : memref<128x1xf32, #tpu.memory_space<vmem>>, vector<128x1xf32>
    tpu.vector_store %arg3[%c0_3, %c0_4], %4 {strides = array<i32>} : memref<128x1xf32, #tpu.memory_space<vmem>>, vector<128x1xf32>,
    return
  }
  func.func @transform_0(%arg0: i32) -> (i32, i32) {
    %c0_i32 = arith.constant 0 : i32
    %c0_i32_0 = arith.constant 0 : i32
    return %arg0, %c0_i32 : i32, i32
  }
  func.func @transform_1(%arg0: i32) -> (i32, i32) {
    %c0_i32 = arith.constant 0 : i32
    %c0_i32_0 = arith.constant 0 : i32
    return %arg0, %c0_i32 : i32, i32
  }
  func.func @transform_2(%arg0: i32) -> (i32, i32) {
    %c0_i32 = arith.constant 0 : i32
    %c0_i32_0 = arith.constant 0 : i32
    return %arg0, %c0_i32 : i32, i32
  }
}

</mosaic_0001>

<llo_original>
// kernel: factorization_machine_forward.1
$region0: #{factorization_machine_forward.1}
  #allocation0 [shape = 'u32[]', space=smem, size = 0x4, offset = 0x4, fixed_abs, tag = 'smem constant byte address 0x4 - core index']
  #allocation1 [shape = 'u32[144,128]{1,0:T(1,128)}', space=vmem, size = 0x12000, scoped, tag = 'internal scratch']
  %s0 = inlined_call_operand.vmem [shape: f32[128,35], index: 0, kind: input, shape index: {}]
  %s1 = inlined_call_operand.vmem [shape: f32[128,35], index: 1, kind: input, shape index: {}]
  %s2 = inlined_call_operand.vmem [shape: f32[128,1], index: 2, kind: output, shape index: {}]
  %s3 = sld [smem:[#allocation0]]
  $region18: #{factorization_machine_forward.1} parent=0
    _
  %s5 = ssub.s32 1, %s3
  %s6 = scalar_select 0, %s5, %s3
  // Predicated region
  $region2: #{factorization_machine_forward.1} parent=0 // pred_check
    _
  $region3: #{factorization_machine_forward.1} parent=0 // pred_check_branch
    %8 = sbr.rel (0) target = $region5
  $region4: #{factorization_machine_forward.1} parent=0 // pred_region
    _
  $region5: #{factorization_machine_forward.1} parent=0 // pred_fallthru
    _
  // Predicated region
  $region6: #{factorization_machine_forward.1} parent=0 // pred_check
    _
  $region7: #{factorization_machine_forward.1} parent=0 // pred_check_branch
    %10 = sbr.rel (0) target = $region9
  $region8: #{factorization_machine_forward.1} parent=0 // pred_region
    _
  $region9: #{factorization_machine_forward.1} parent=0 // pred_fallthru
    _
  %v11 = vld [vmem:[%s0] sm:$0xff]
  %v12 = vld [vmem:[%s0 + $0x8] sm:$0xff]
  %v13 = vld [vmem:[%s0 + $0x10] sm:$0xff]
  %v14 = vld [vmem:[%s0 + $0x18] sm:$0xff]
  %v15 = vld [vmem:[%s0 + $0x20] sm:$0xff]
  %v16 = vld [vmem:[%s0 + $0x28] sm:$0xff]
  %v17 = vld [vmem:[%s0 + $0x30] sm:$0xff]
  %v18 = vld [vmem:[%s0 + $0x38] sm:$0xff]
  %v19 = vld [vmem:[%s0 + $0x40] sm:$0xff]
  %v20 = vld [vmem:[%s0 + $0x48] sm:$0xff]
  %v21 = vld [vmem:[%s0 + $0x50] sm:$0xff]
  %v22 = vld [vmem:[%s0 + $0x58] sm:$0xff]
  %v23 = vld [vmem:[%s0 + $0x60] sm:$0xff]
  %v24 = vld [vmem:[%s0 + $0x68] sm:$0xff]
  %v25 = vld [vmem:[%s0 + $0x70] sm:$0xff]
  %v26 = vld [vmem:[%s0 + $0x78] sm:$0xff]
  %v27 = vld [vmem:[%s1] sm:$0xff]
  %v28 = vld [vmem:[%s1 + $0x8] sm:$0xff]
  %v29 = vld [vmem:[%s1 + $0x10] sm:$0xff]
  %v30 = vld [vmem:[%s1 + $0x18] sm:$0xff]
  %v31 = vld [vmem:[%s1 + $0x20] sm:$0xff]
  %v32 = vld [vmem:[%s1 + $0x28] sm:$0xff]
  %v33 = vld [vmem:[%s1 + $0x30] sm:$0xff]
  %v34 = vld [vmem:[%s1 + $0x38] sm:$0xff]
  %v35 = vld [vmem:[%s1 + $0x40] sm:$0xff]
  %v36 = vld [vmem:[%s1 + $0x48] sm:$0xff]
  %v37 = vld [vmem:[%s1 + $0x50] sm:$0xff]
  %v38 = vld [vmem:[%s1 + $0x58] sm:$0xff]
  %v39 = vld [vmem:[%s1 + $0x60] sm:$0xff]
  %v40 = vld [vmem:[%s1 + $0x68] sm:$0xff]
  %v41 = vld [vmem:[%s1 + $0x70] sm:$0xff]
  %v42 = vld [vmem:[%s1 + $0x78] sm:$0xff]
  %v43 = vmul.f32 %v11, %v27
  %v44 = vmul.f32 %v12, %v28
  %v45 = vmul.f32 %v13, %v29
  %v46 = vmul.f32 %v14, %v30
  %v47 = vmul.f32 %v15, %v31
  %v48 = vmul.f32 %v16, %v32
  %v49 = vmul.f32 %v17, %v33
  %v50 = vmul.f32 %v18, %v34
  %v51 = vmul.f32 %v19, %v35
  %v52 = vmul.f32 %v20, %v36
  %v53 = vmul.f32 %v21, %v37
  %v54 = vmul.f32 %v22, %v38
  %v55 = vmul.f32 %v23, %v39
  %v56 = vmul.f32 %v24, %v40
  %v57 = vmul.f32 %v25, %v41
  %v58 = vmul.f32 %v26, %v42
  %vm59 = vcmask 285696
  %v60 = vsel %vm59, %v43, 0.0
  %61 = vadd.xlane.f32.xlu0 %v60
  %v62 = vpop.xlane.xlu0 %61
  %v63 = vsel %vm59, %v44, 0.0
  %64 = vadd.xlane.f32.xlu0 %v63
  %v65 = vpop.xlane.xlu0 %64
  %v66 = vsel %vm59, %v45, 0.0
  %67 = vadd.xlane.f32.xlu0 %v66
  %v68 = vpop.xlane.xlu0 %67
  %v69 = vsel %vm59, %v46, 0.0
  %70 = vadd.xlane.f32.xlu0 %v69
  %v71 = vpop.xlane.xlu0 %70
  %v72 = vsel %vm59, %v47, 0.0
  %73 = vadd.xlane.f32.xlu0 %v72
  %v74 = vpop.xlane.xlu0 %73
  %v75 = vsel %vm59, %v48, 0.0
  %76 = vadd.xlane.f32.xlu0 %v75
  %v77 = vpop.xlane.xlu0 %76
  %v78 = vsel %vm59, %v49, 0.0
  %79 = vadd.xlane.f32.xlu0 %v78
  %v80 = vpop.xlane.xlu0 %79
  %v81 = vsel %vm59, %v50, 0.0
  %82 = vadd.xlane.f32.xlu0 %v81
  %v83 = vpop.xlane.xlu0 %82
  %v84 = vsel %vm59, %v51, 0.0
  %85 = vadd.xlane.f32.xlu0 %v84
  %v86 = vpop.xlane.xlu0 %85
  %v87 = vsel %vm59, %v52, 0.0
  %88 = vadd.xlane.f32.xlu0 %v87
  %v89 = vpop.xlane.xlu0 %88
  %v90 = vsel %vm59, %v53, 0.0
  %91 = vadd.xlane.f32.xlu0 %v90
  %v92 = vpop.xlane.xlu0 %91
  %v93 = vsel %vm59, %v54, 0.0
  %94 = vadd.xlane.f32.xlu0 %v93
  %v95 = vpop.xlane.xlu0 %94
  %v96 = vsel %vm59, %v55, 0.0
  %97 = vadd.xlane.f32.xlu0 %v96
  %v98 = vpop.xlane.xlu0 %97
  %v99 = vsel %vm59, %v56, 0.0
  %100 = vadd.xlane.f32.xlu0 %v99
  %v101 = vpop.xlane.xlu0 %100
  %v102 = vsel %vm59, %v57, 0.0
  %103 = vadd.xlane.f32.xlu0 %v102
  %v104 = vpop.xlane.xlu0 %103
  %v105 = vsel %vm59, %v58, 0.0
  %106 = vadd.xlane.f32.xlu0 %v105
  %v107 = vpop.xlane.xlu0 %106
  %vm108 = vcmask 7168
  %109 = vst.msk [vmem:[%s2] sm:$0xff] %vm108, %v62
  %110 = vst.msk [vmem:[%s2 + $0x8] sm:$0xff] %vm108, %v65
  %111 = vst.msk [vmem:[%s2 + $0x10] sm:$0xff] %vm108, %v68
  %112 = vst.msk [vmem:[%s2 + $0x18] sm:$0xff] %vm108, %v71
  %113 = vst.msk [vmem:[%s2 + $0x20] sm:$0xff] %vm108, %v74
  %114 = vst.msk [vmem:[%s2 + $0x28] sm:$0xff] %vm108, %v77
  %115 = vst.msk [vmem:[%s2 + $0x30] sm:$0xff] %vm108, %v80
  %116 = vst.msk [vmem:[%s2 + $0x38] sm:$0xff] %vm108, %v83
  %117 = vst.msk [vmem:[%s2 + $0x40] sm:$0xff] %vm108, %v86
  %118 = vst.msk [vmem:[%s2 + $0x48] sm:$0xff] %vm108, %v89
  %119 = vst.msk [vmem:[%s2 + $0x50] sm:$0xff] %vm108, %v92
  %120 = vst.msk [vmem:[%s2 + $0x58] sm:$0xff] %vm108, %v95
  %121 = vst.msk [vmem:[%s2 + $0x60] sm:$0xff] %vm108, %v98
  %122 = vst.msk [vmem:[%s2 + $0x68] sm:$0xff] %vm108, %v101
  %123 = vst.msk [vmem:[%s2 + $0x70] sm:$0xff] %vm108, %v104
  %124 = vst.msk [vmem:[%s2 + $0x78] sm:$0xff] %vm108, %v107
  // Predicated region
  $region10: #{factorization_machine_forward.1} parent=0 // pred_check
    _
  $region11: #{factorization_machine_forward.1} parent=0 // pred_check_branch
    %126 = sbr.rel (0) target = $region13
  $region12: #{factorization_machine_forward.1} parent=0 // pred_region
    _
  $region13: #{factorization_machine_forward.1} parent=0 // pred_fallthru
    _
  // Predicated region
  $region14: #{factorization_machine_forward.1} parent=0 // pred_check
    _
  $region15: #{factorization_machine_forward.1} parent=0 // pred_check_branch
    %128 = sbr.rel (0) target = $region17
  $region16: #{factorization_machine_forward.1} parent=0 // pred_region
    _
  $region17: #{factorization_machine_forward.1} parent=0 // pred_fallthru
    _

</llo_original>
